<compile_context>
chip_gen: v5e
topology: v5e:2x2
jax: 0.10.0
libtpu: 0.0.40
codegen_flags: <defaults>
</compile_context>

<pallas_src>
import jax
import jax.numpy as jnp
from jax.experimental import pallas as pl
from jax.experimental.pallas import tpu as pltpu

LANES = 128        # every feature (lane) dim is padded to this
SUBLANES = 8       # every row dim is padded to a multiple of this
MAX_EDGE_TILE = 512


def _round_up(x, m):
    return ((x + m - 1) // m) * m


def _pad2(x, rows, cols):
    r, c = x.shape
    return jnp.pad(x, ((0, rows - r), (0, cols - c)))


# ----------------------------------------------------------------------------
# Fused kernel
# ----------------------------------------------------------------------------
def _make_fused_kernel(n1, n2, te, n_pad):
    """Fused forward for an n1-layer MLP1 and n2-layer MLP2, edge tile `te`."""

    def kernel(*refs):
        # --- unpack refs (order matches in_specs / out_specs / scratch_shapes) ---
        pos = 0
        feat_ref = refs[pos]; pos += 1
        mlp1 = []
        for _ in range(n1):
            mlp1.append((refs[pos], refs[pos + 1])); pos += 2
        w2a_ref, w2b_ref, b20_ref = refs[pos], refs[pos + 1], refs[pos + 2]
        pos += 3
        mlp2_rest = []
        for _ in range(n2 - 1):
            mlp2_rest.append((refs[pos], refs[pos + 1])); pos += 2
        idx_ref, invd2_ref, exd_ref = refs[pos], refs[pos + 1], refs[pos + 2]
        pos += 3
        out_ref = refs[pos]; pos += 1
        h_scr = refs[pos]

        # --- MLP1 over node features: computed ONCE, result persists in VMEM ---
        # Grid axis is "arbitrary" (sequential on one TC), so h_scr written at
        # program_id 0 is valid for every later edge block.
        @pl.when(pl.program_id(0) == 0)
        def _():
            x = feat_ref[...]
            for li, (w_ref, b_ref) in enumerate(mlp1):
                x = jnp.dot(x, w_ref[...], preferred_element_type=jnp.float32)
                x = x + b_ref[...]
                if li < n1 - 1:
                    x = jnp.maximum(x, 0.0)
            h_scr[...] = x

        # --- vectorized pair gather + sum with 1/d^2 folded in:
        #       S[e, i] = invd2[e] * ((i == idx[e,0]) + (i == idx[e,1]))
        #       hf      = S @ h          (single MXU matmul, no per-edge loop)
        idx = idx_ref[...]                        # (te, 2) int32
        scale = invd2_ref[...]                    # (te, 1) f32, 0 in padded rows
        cols = jax.lax.broadcasted_iota(jnp.int32, (te, n_pad), 1)
        s = ((cols == idx[:, 0:1]).astype(jnp.float32)
             + (cols == idx[:, 1:2]).astype(jnp.float32)) * scale
        hf = jnp.dot(s, h_scr[...], preferred_element_type=jnp.float32)  # (te, 128)

        # --- MLP2 with the concat folded into split first-layer weights ---
        y = (jnp.dot(hf, w2a_ref[...], preferred_element_type=jnp.float32)
             + jnp.dot(exd_ref[...], w2b_ref[...], preferred_element_type=jnp.float32)
             + b20_ref[...])
        if n2 > 1:
            y = jnp.maximum(y, 0.0)
        for li, (w_ref, b_ref) in enumerate(mlp2_rest):
            y = jnp.dot(y, w_ref[...], preferred_element_type=jnp.float32)
            y = y + b_ref[...]
            if li < n2 - 2:
                y = jnp.maximum(y, 0.0)
        out_ref[...] = y.astype(out_ref.dtype)

    return kernel


# ----------------------------------------------------------------------------
# Forward wrapper (padding plumbing + single pallas_call)
# ----------------------------------------------------------------------------
def hopping_nn_forward(params1, params2, feat, hopping_index, d, ex_d):
    n_nodes = feat.shape[0]
    n_edges = hopping_index.shape[0]
    d1 = params1[-1][0].shape[1]        # MLP1 output width
    d_out = params2[-1][0].shape[1]     # final output width
    n1, n2 = len(params1), len(params2)

    n_pad = _round_up(max(n_nodes, SUBLANES), SUBLANES)
    te = min(MAX_EDGE_TILE, _round_up(max(n_edges, SUBLANES), SUBLANES))
    e_pad = _round_up(max(n_edges, SUBLANES), te)
    n_blocks = e_pad // te

    # Lane-dense padded operands (zero padding is exact: padded lanes/rows contribute 0,
    # and padded edge rows — idx=0, invd2=0 — are sliced off at the end).
    feat_p = _pad2(feat.astype(jnp.float32), n_pad, LANES)
    exd_p = _pad2(ex_d.astype(jnp.float32), e_pad, LANES)
    dd = d.astype(jnp.float32).reshape(n_edges, 1)
    invd2_p = jnp.zeros((e_pad, 1), jnp.float32).at[:n_edges].set(1.0 / (dd * dd))
    idx_p = jnp.zeros((e_pad, 2), jnp.int32).at[:n_edges].set(
        hopping_index.astype(jnp.int32))

    operands = [feat_p]
    in_specs = [pl.BlockSpec((n_pad, LANES), lambda i: (0, 0))]

    def add_const(arr):
        operands.append(arr)
        r, c = arr.shape
        in_specs.append(pl.BlockSpec((r, c), lambda i: (0, 0)))

    for (w, b) in params1:
        add_const(_pad2(w.astype(jnp.float32), LANES, LANES))
        add_const(_pad2(b.astype(jnp.float32).reshape(1, -1), 1, LANES))

    # MLP2 first layer split: rows [0:d1] multiply the hopping features,
    # rows [d1:] multiply ex_d  -> concat is never materialized.
    w20, b20 = params2[0]
    add_const(_pad2(w20[:d1, :].astype(jnp.float32), LANES, LANES))   # W2a
    add_const(_pad2(w20[d1:, :].astype(jnp.float32), LANES, LANES))   # W2b
    add_const(_pad2(b20.astype(jnp.float32).reshape(1, -1), 1, LANES))
    for (w, b) in params2[1:]:
        add_const(_pad2(w.astype(jnp.float32), LANES, LANES))
        add_const(_pad2(b.astype(jnp.float32).reshape(1, -1), 1, LANES))

    # Per-edge-block streamed inputs (indices in VMEM, no SMEM ceiling).
    operands += [idx_p, invd2_p, exd_p]
    in_specs += [pl.BlockSpec((te, 2), lambda i: (i, 0)),
                 pl.BlockSpec((te, 1), lambda i: (i, 0)),
                 pl.BlockSpec((te, LANES), lambda i: (i, 0))]

    kernel = _make_fused_kernel(n1, n2, te, n_pad)

    # Advisory cost estimate so XLA schedules surrounding HLO sensibly.
    flops = (2 * n_pad * LANES * LANES * n1
             + n_blocks * (2 * te * n_pad * LANES
                           + 2 * te * LANES * LANES * (n2 + 1)))
    bytes_accessed = (sum(int(o.size) * o.dtype.itemsize for o in operands)
                      + e_pad * LANES * 4)

    out_p = pl.pallas_call(
        kernel,
        out_shape=jax.ShapeDtypeStruct((e_pad, LANES), jnp.float32),
        grid_spec=pltpu.PrefetchScalarGridSpec(
            num_scalar_prefetch=0,
            grid=(n_blocks,),                       # edge-row blocks (sequential)
            in_specs=in_specs,
            out_specs=pl.BlockSpec((te, LANES), lambda i: (i, 0)),
            scratch_shapes=[pltpu.VMEM((n_pad, LANES), jnp.float32)]),  # h (persists)
        compiler_params=pltpu.CompilerParams(
            dimension_semantics=("arbitrary",),     # h_scr reuse across blocks
            vmem_limit_bytes=48 * 1024 * 1024),
        cost_estimate=pl.CostEstimate(flops=int(flops), transcendentals=0,
                                      bytes_accessed=int(bytes_accessed)),
    )(*operands)

    return out_p[:n_edges, :d_out]


# ----------------------------------------------------------------------------
# Parameter init + pure-JAX reference (verification)
# ----------------------------------------------------------------------------
def init_mlp_params(key, dim_list):
    """nn.Linear-style init: U(-1/sqrt(fan_in), 1/sqrt(fan_in))."""
    params = []
    for i in range(len(dim_list) - 1):
        key, kw, kb = jax.random.split(key, 3)
        bound = 1.0 / jnp.sqrt(jnp.float32(dim_list[i]))
        w = jax.random.uniform(kw, (dim_list[i], dim_list[i + 1]),
                               jnp.float32, -bound, bound)
        b = jax.random.uniform(kb, (dim_list[i + 1],), jnp.float32, -bound, bound)
        params.append((w, b))
    return params


def reference_forward(params1, params2, feat, hopping_index, d, ex_d):
    def mlp(params, x):
        for i, (w, b) in enumerate(params):
            x = jnp.dot(x, w, precision=jax.lax.Precision.HIGHEST) + b
            if i < len(params) - 1:
                x = jax.nn.relu(x)
        return x
    h = mlp(params1, feat)
    hf = jnp.sum(h[hopping_index], axis=1)
    hf = jnp.concatenate([hf / d ** 2, ex_d], axis=1)
    return mlp(params2, hf)


# ----------------------------------------------------------------------------
if __name__ == "__main__":
    key = jax.random.PRNGKey(0)

    N_NODES = 16      # atoms / nodes
    N_EDGES = 12      # hopping pairs
    D_EX = 4          # extra distance-feature width
    dim_list1 = [8, 32, 16]
    dim_list2 = [dim_list1[-1] + D_EX, 32, 8]   # MLP2 input = D1 + Dex

    k_feat, k_idx, k_d, k_exd, k_p1, k_p2 = jax.random.split(key, 6)
    feat = jax.random.normal(k_feat, (N_NODES, dim_list1[0]), jnp.float32)
    hopping_index = jax.random.randint(k_idx, (N_EDGES, 2), 0, N_NODES,
                                       dtype=jnp.int32)
    d = jax.random.uniform(k_d, (N_EDGES, 1), jnp.float32, 0.5, 2.0)
    ex_d = jax.random.normal(k_exd, (N_EDGES, D_EX), jnp.float32)

    params1 = init_mlp_params(k_p1, dim_list1)
    params2 = init_mlp_params(k_p2, dim_list2)

    fwd = jax.jit(hopping_nn_forward)
    out = fwd(params1, params2, feat, hopping_index, d, ex_d)
    out = jax.block_until_ready(out)

    ref = reference_forward(params1, params2, feat, hopping_index, d, ex_d)
    assert out.shape == (N_EDGES, dim_list2[-1])
    assert jnp.allclose(out, ref, atol=5e-4, rtol=5e-4)

    print("KERNEL_OK")
</pallas_src>

<mosaic_0001>
module attributes {stable_mosaic.version = 11 : i64} {
  func.func @kernel(%arg0: i32, %arg1: memref<16x128xf32, #tpu.memory_space<vmem>>, %arg2: memref<128x128xf32, #tpu.memory_space<vmem>>, %arg3: memref<1x128xf32, #tpu.memory_space<vmem>>, %arg4: memref<128x128xf32, #tpu.memory_space<vmem>>, %arg5: memref<1x128xf32, #tpu.memory_space<vmem>>, %arg6: memref<128x128xf32, #tpu.memory_space<vmem>>, %arg7: memref<128x128xf32, #tpu.memory_space<vmem>>, %arg8: memref<1x128xf32, #tpu.memory_space<vmem>>, %arg9: memref<128x128xf32, #tpu.memory_space<vmem>>, %arg10: memref<1x128xf32, #tpu.memory_space<vmem>>, %arg11: memref<16x2xi32, #tpu.memory_space<vmem>>, %arg12: memref<16x1xf32, #tpu.memory_space<vmem>>, %arg13: memref<16x128xf32, #tpu.memory_space<vmem>>, %arg14: memref<16x128xf32, #tpu.memory_space<vmem>>, %arg15: memref<16x128xf32, #tpu.memory_space<vmem>>) attributes {dimension_semantics = [#tpu.dimension_semantics<arbitrary>], iteration_bounds = array<i64: 1>, scalar_prefetch = 0 : i64, scratch_operands = 1 : i64, tpu.core_type = #tpu.core_type<tc>, window_params = [{pipeline_mode = #tpu.pipeline_mode<synchronous>, transform_indices = @transform_0, window_bounds = array<i64: 16, 128>}, {pipeline_mode = #tpu.pipeline_mode<synchronous>, transform_indices = @transform_1, window_bounds = array<i64: 128, 128>}, {pipeline_mode = #tpu.pipeline_mode<synchronous>, transform_indices = @transform_2, window_bounds = array<i64: 1, 128>}, {pipeline_mode = #tpu.pipeline_mode<synchronous>, transform_indices = @transform_3, window_bounds = array<i64: 128, 128>}, {pipeline_mode = #tpu.pipeline_mode<synchronous>, transform_indices = @transform_4, window_bounds = array<i64: 1, 128>}, {pipeline_mode = #tpu.pipeline_mode<synchronous>, transform_indices = @transform_5, window_bounds = array<i64: 128, 128>}, {pipeline_mode = #tpu.pipeline_mode<synchronous>, transform_indices = @transform_6, window_bounds = array<i64: 128, 128>}, {pipeline_mode = #tpu.pipeline_mode<synchronous>, transform_indices = @transform_7, window_bounds = array<i64: 1, 128>}, {pipeline_mode = #tpu.pipeline_mode<synchronous>, transform_indices = @transform_8, window_bounds = array<i64: 128, 128>}, {pipeline_mode = #tpu.pipeline_mode<synchronous>, transform_indices = @transform_9, window_bounds = array<i64: 1, 128>}, {transform_indices = @transform_10, window_bounds = array<i64: 16, 2>}, {transform_indices = @transform_11, window_bounds = array<i64: 16, 1>}, {transform_indices = @transform_12, window_bounds = array<i64: 16, 128>}, {transform_indices = @transform_13, window_bounds = array<i64: 16, 128>}]} {
    %c0_i32 = arith.constant 0 : i32
    %0 = arith.cmpi eq, %arg0, %c0_i32 : i32
    %1 = arith.extui %0 : i1 to i32
    %c0_i32_0 = arith.constant 0 : i32
    %2 = arith.cmpi ne, %1, %c0_i32_0 : i32
    scf.if %2 {
      %c0_24 = arith.constant 0 : index
      %c0_25 = arith.constant 0 : index
      %38 = vector.load %arg1[%c0_24, %c0_25] : memref<16x128xf32, #tpu.memory_space<vmem>>, vector<16x128xf32>
      %c0_26 = arith.constant 0 : index
      %c0_27 = arith.constant 0 : index
      %39 = vector.load %arg2[%c0_26, %c0_27] : memref<128x128xf32, #tpu.memory_space<vmem>>, vector<128x128xf32>
      %cst_28 = arith.constant dense<0.000000e+00> : vector<16x128xf32>
      %40 = tpu.matmul %38, %39, %cst_28 {dimension_numbers = #tpu.dot_dimension_numbers<[1], [0], [0], [1], [0, 0, 1, 1], [], []>} : vector<16x128xf32>, vector<128x128xf32>, vector<16x128xf32> -> vector<16x128xf32>
      %c0_29 = arith.constant 0 : index
      %c0_30 = arith.constant 0 : index
      %41 = vector.load %arg3[%c0_29, %c0_30] : memref<1x128xf32, #tpu.memory_space<vmem>>, vector<1x128xf32>
      %42 = vector.broadcast %41 : vector<1x128xf32> to vector<16x128xf32>
      %43 = arith.addf %40, %42 : vector<16x128xf32>
      %cst_31 = arith.constant 0.000000e+00 : f32
      %44 = vector.broadcast %cst_31 : f32 to vector<16x128xf32>
      %45 = arith.maximumf %43, %44 : vector<16x128xf32>
      %c0_32 = arith.constant 0 : index
      %c0_33 = arith.constant 0 : index
      %46 = vector.load %arg4[%c0_32, %c0_33] : memref<128x128xf32, #tpu.memory_space<vmem>>, vector<128x128xf32>
      %cst_34 = arith.constant dense<0.000000e+00> : vector<16x128xf32>
      %47 = tpu.matmul %45, %46, %cst_34 {dimension_numbers = #tpu.dot_dimension_numbers<[1], [0], [0], [1], [0, 0, 1, 1], [], []>} : vector<16x128xf32>, vector<128x128xf32>, vector<16x128xf32> -> vector<16x128xf32>
      %c0_35 = arith.constant 0 : index
      %c0_36 = arith.constant 0 : index
      %48 = vector.load %arg5[%c0_35, %c0_36] : memref<1x128xf32, #tpu.memory_space<vmem>>, vector<1x128xf32>
      %49 = vector.broadcast %48 : vector<1x128xf32> to vector<16x128xf32>
      %50 = arith.addf %47, %49 : vector<16x128xf32>
      %c0_37 = arith.constant 0 : index
      %c0_38 = arith.constant 0 : index
      %51 = vector.load %arg15[%c0_37, %c0_38] : memref<16x128xf32, #tpu.memory_space<vmem>>, vector<16x128xf32>
      tpu.vector_store %arg15[%c0_37, %c0_38], %50 {strides = array<i32>} : memref<16x128xf32, #tpu.memory_space<vmem>>, vector<16x128xf32>,
    } else {
    }
    %c0 = arith.constant 0 : index
    %c0_1 = arith.constant 0 : index
    %3 = vector.load %arg11[%c0, %c0_1] : memref<16x2xi32, #tpu.memory_space<vmem>>, vector<16x2xi32>
    %c0_2 = arith.constant 0 : index
    %c0_3 = arith.constant 0 : index
    %4 = vector.load %arg12[%c0_2, %c0_3] : memref<16x1xf32, #tpu.memory_space<vmem>>, vector<16x1xf32>
    %5 = tpu.iota {dimensions = array<i32: 1>} : vector<16x16xi32>
    %6 = vector.extract_strided_slice %3 {offsets = [0, 0], sizes = [16, 1], strides = [1, 1]} : vector<16x2xi32> to vector<16x1xi32>
    %7 = vector.broadcast %6 : vector<16x1xi32> to vector<16x16xi32>
    %8 = arith.cmpi eq, %5, %7 : vector<16x16xi32>
    %9 = arith.extui %8 : vector<16x16xi1> to vector<16x16xi32>
    %10 = arith.sitofp %9 : vector<16x16xi32> to vector<16x16xf32>
    %11 = vector.extract_strided_slice %3 {offsets = [0, 1], sizes = [16, 1], strides = [1, 1]} : vector<16x2xi32> to vector<16x1xi32>
    %12 = vector.broadcast %11 : vector<16x1xi32> to vector<16x16xi32>
    %13 = arith.cmpi eq, %5, %12 : vector<16x16xi32>
    %14 = arith.extui %13 : vector<16x16xi1> to vector<16x16xi32>
    %15 = arith.sitofp %14 : vector<16x16xi32> to vector<16x16xf32>
    %16 = arith.addf %10, %15 : vector<16x16xf32>
    %17 = vector.broadcast %4 : vector<16x1xf32> to vector<16x16xf32>
    %18 = arith.mulf %16, %17 : vector<16x16xf32>
    %c0_4 = arith.constant 0 : index
    %c0_5 = arith.constant 0 : index
    %19 = vector.load %arg15[%c0_4, %c0_5] : memref<16x128xf32, #tpu.memory_space<vmem>>, vector<16x128xf32>
    %cst = arith.constant dense<0.000000e+00> : vector<16x128xf32>
    %20 = tpu.matmul %18, %19, %cst {dimension_numbers = #tpu.dot_dimension_numbers<[1], [0], [0], [1], [0, 0, 1, 1], [], []>} : vector<16x16xf32>, vector<16x128xf32>, vector<16x128xf32> -> vector<16x128xf32>
    %c0_6 = arith.constant 0 : index
    %c0_7 = arith.constant 0 : index
    %21 = vector.load %arg6[%c0_6, %c0_7] : memref<128x128xf32, #tpu.memory_space<vmem>>, vector<128x128xf32>
    %cst_8 = arith.constant dense<0.000000e+00> : vector<16x128xf32>
    %22 = tpu.matmul %20, %21, %cst_8 {dimension_numbers = #tpu.dot_dimension_numbers<[1], [0], [0], [1], [0, 0, 1, 1], [], []>} : vector<16x128xf32>, vector<128x128xf32>, vector<16x128xf32> -> vector<16x128xf32>
    %c0_9 = arith.constant 0 : index
    %c0_10 = arith.constant 0 : index
    %23 = vector.load %arg13[%c0_9, %c0_10] : memref<16x128xf32, #tpu.memory_space<vmem>>, vector<16x128xf32>
    %c0_11 = arith.constant 0 : index
    %c0_12 = arith.constant 0 : index
    %24 = vector.load %arg7[%c0_11, %c0_12] : memref<128x128xf32, #tpu.memory_space<vmem>>, vector<128x128xf32>
    %cst_13 = arith.constant dense<0.000000e+00> : vector<16x128xf32>
    %25 = tpu.matmul %23, %24, %cst_13 {dimension_numbers = #tpu.dot_dimension_numbers<[1], [0], [0], [1], [0, 0, 1, 1], [], []>} : vector<16x128xf32>, vector<128x128xf32>, vector<16x128xf32> -> vector<16x128xf32>
    %26 = arith.addf %22, %25 : vector<16x128xf32>
    %c0_14 = arith.constant 0 : index
    %c0_15 = arith.constant 0 : index
    %27 = vector.load %arg8[%c0_14, %c0_15] : memref<1x128xf32, #tpu.memory_space<vmem>>, vector<1x128xf32>
    %28 = vector.broadcast %27 : vector<1x128xf32> to vector<16x128xf32>
    %29 = arith.addf %26, %28 : vector<16x128xf32>
    %cst_16 = arith.constant 0.000000e+00 : f32
    %30 = vector.broadcast %cst_16 : f32 to vector<16x128xf32>
    %31 = arith.maximumf %29, %30 : vector<16x128xf32>
    %c0_17 = arith.constant 0 : index
    %c0_18 = arith.constant 0 : index
    %32 = vector.load %arg9[%c0_17, %c0_18] : memref<128x128xf32, #tpu.memory_space<vmem>>, vector<128x128xf32>
    %cst_19 = arith.constant dense<0.000000e+00> : vector<16x128xf32>
    %33 = tpu.matmul %31, %32, %cst_19 {dimension_numbers = #tpu.dot_dimension_numbers<[1], [0], [0], [1], [0, 0, 1, 1], [], []>} : vector<16x128xf32>, vector<128x128xf32>, vector<16x128xf32> -> vector<16x128xf32>
    %c0_20 = arith.constant 0 : index
    %c0_21 = arith.constant 0 : index
    %34 = vector.load %arg10[%c0_20, %c0_21] : memref<1x128xf32, #tpu.memory_space<vmem>>, vector<1x128xf32>
    %35 = vector.broadcast %34 : vector<1x128xf32> to vector<16x128xf32>
    %36 = arith.addf %33, %35 : vector<16x128xf32>
    %c0_22 = arith.constant 0 : index
    %c0_23 = arith.constant 0 : index
    %37 = vector.load %arg14[%c0_22, %c0_23] : memref<16x128xf32, #tpu.memory_space<vmem>>, vector<16x128xf32>
    tpu.vector_store %arg14[%c0_22, %c0_23], %36 {strides = array<i32>} : memref<16x128xf32, #tpu.memory_space<vmem>>, vector<16x128xf32>,
    return
  }
  func.func @transform_0(%arg0: i32) -> (i32, i32) {
    %c0_i32 = arith.constant 0 : i32
    %c0_i32_0 = arith.constant 0 : i32
    %c0_i32_1 = arith.constant 0 : i32
    return %c0_i32, %c0_i32_0 : i32, i32
  }
  func.func @transform_1(%arg0: i32) -> (i32, i32) {
    %c0_i32 = arith.constant 0 : i32
    %c0_i32_0 = arith.constant 0 : i32
    %c0_i32_1 = arith.constant 0 : i32
    return %c0_i32, %c0_i32_0 : i32, i32
  }
  func.func @transform_2(%arg0: i32) -> (i32, i32) {
    %c0_i32 = arith.constant 0 : i32
    %c0_i32_0 = arith.constant 0 : i32
    %c0_i32_1 = arith.constant 0 : i32
    return %c0_i32, %c0_i32_0 : i32, i32
  }
  func.func @transform_3(%arg0: i32) -> (i32, i32) {
    %c0_i32 = arith.constant 0 : i32
    %c0_i32_0 = arith.constant 0 : i32
    %c0_i32_1 = arith.constant 0 : i32
    return %c0_i32, %c0_i32_0 : i32, i32
  }
  func.func @transform_4(%arg0: i32) -> (i32, i32) {
    %c0_i32 = arith.constant 0 : i32
    %c0_i32_0 = arith.constant 0 : i32
    %c0_i32_1 = arith.constant 0 : i32
    return %c0_i32, %c0_i32_0 : i32, i32
  }
  func.func @transform_5(%arg0: i32) -> (i32, i32) {
    %c0_i32 = arith.constant 0 : i32
    %c0_i32_0 = arith.constant 0 : i32
    %c0_i32_1 = arith.constant 0 : i32
    return %c0_i32, %c0_i32_0 : i32, i32
  }
  func.func @transform_6(%arg0: i32) -> (i32, i32) {
    %c0_i32 = arith.constant 0 : i32
    %c0_i32_0 = arith.constant 0 : i32
    %c0_i32_1 = arith.constant 0 : i32
    return %c0_i32, %c0_i32_0 : i32, i32
  }
  func.func @transform_7(%arg0: i32) -> (i32, i32) {
    %c0_i32 = arith.constant 0 : i32
    %c0_i32_0 = arith.constant 0 : i32
    %c0_i32_1 = arith.constant 0 : i32
    return %c0_i32, %c0_i32_0 : i32, i32
  }
  func.func @transform_8(%arg0: i32) -> (i32, i32) {
    %c0_i32 = arith.constant 0 : i32
    %c0_i32_0 = arith.constant 0 : i32
    %c0_i32_1 = arith.constant 0 : i32
    return %c0_i32, %c0_i32_0 : i32, i32
  }
  func.func @transform_9(%arg0: i32) -> (i32, i32) {
    %c0_i32 = arith.constant 0 : i32
    %c0_i32_0 = arith.constant 0 : i32
    %c0_i32_1 = arith.constant 0 : i32
    return %c0_i32, %c0_i32_0 : i32, i32
  }
  func.func @transform_10(%arg0: i32) -> (i32, i32) {
    %c0_i32 = arith.constant 0 : i32
    %c0_i32_0 = arith.constant 0 : i32
    return %arg0, %c0_i32 : i32, i32
  }
  func.func @transform_11(%arg0: i32) -> (i32, i32) {
    %c0_i32 = arith.constant 0 : i32
    %c0_i32_0 = arith.constant 0 : i32
    return %arg0, %c0_i32 : i32, i32
  }
  func.func @transform_12(%arg0: i32) -> (i32, i32) {
    %c0_i32 = arith.constant 0 : i32
    %c0_i32_0 = arith.constant 0 : i32
    return %arg0, %c0_i32 : i32, i32
  }
  func.func @transform_13(%arg0: i32) -> (i32, i32) {
    %c0_i32 = arith.constant 0 : i32
    %c0_i32_0 = arith.constant 0 : i32
    return %arg0, %c0_i32 : i32, i32
  }
}

</mosaic_0001>

<llo_original>
// kernel: mul.1
$region0: #{mul.1}
  #allocation0 [shape = 's32[1]{0}', space=sflag, size = 0x4, scoped, tag = 'scoped memory for mul.1']
  %s0 = inlined_call_operand.vmem [shape: f32[12,1], index: 0, kind: input, shape index: {}, may-alias: {0,1}]
  %s1 = inlined_call_operand.vmem [shape: f32[12,1], index: 1, kind: input, shape index: {}, may-alias: {0,1}]
  %s2 = inlined_call_operand.vmem [shape: f32[12,1], index: 2, kind: output, shape index: {}]
  %v3 = vld [vmem:[%s0] sm:$0x1]
  %v4 = vld [vmem:[%s1] sm:$0x1]
  %5 = xla_tuple %v3, %v4
  %6 = xla_tuple %5
  %v7 = vmul.f32 %v3, %v4
  %8 = xla_tuple %v7
  %9 = vst [vmem:[%s2] sm:$0x1] %v7

// kernel: hopping_nn_forward.1
$region0: #{hopping_nn_forward.1}
  #allocation0 [shape = 'u32[]', space=smem, size = 0x4, offset = 0x4, fixed_abs, tag = 'smem constant byte address 0x4 - core index']
  #allocation1 [shape = 'u32[72,128]{1,0:T(1,128)}', space=vmem, size = 0x9000, scoped, tag = 'internal scratch']
  #allocation2 [shape = 'f32[16,128]{1,0:T(8,128)}', space=vmem, size = 0x2000, scoped, tag = 'scratch operand']
  %s0 = inlined_call_operand.vmem [shape: f32[16,128], index: 0, kind: input, shape index: {}]
  %s1 = inlined_call_operand.vmem [shape: f32[128,128], index: 1, kind: input, shape index: {}]
  %s2 = inlined_call_operand.vmem [shape: f32[1,128], index: 2, kind: input, shape index: {}]
  %s3 = inlined_call_operand.vmem [shape: f32[128,128], index: 3, kind: input, shape index: {}]
  %s4 = inlined_call_operand.vmem [shape: f32[1,128], index: 4, kind: input, shape index: {}]
  %s5 = inlined_call_operand.vmem [shape: f32[128,128], index: 5, kind: input, shape index: {}]
  %s6 = inlined_call_operand.vmem [shape: f32[128,128], index: 6, kind: input, shape index: {}]
  %s7 = inlined_call_operand.vmem [shape: f32[1,128], index: 7, kind: input, shape index: {}]
  %s8 = inlined_call_operand.vmem [shape: f32[128,128], index: 8, kind: input, shape index: {}]
  %s9 = inlined_call_operand.vmem [shape: f32[1,128], index: 9, kind: input, shape index: {}]
  %s10 = inlined_call_operand.vmem [shape: s32[16,2], index: 10, kind: input, shape index: {}]
  %s11 = inlined_call_operand.vmem [shape: f32[16,1], index: 11, kind: input, shape index: {}]
  %s12 = inlined_call_operand.vmem [shape: f32[16,128], index: 12, kind: input, shape index: {}]
  %s13 = inlined_call_operand.vmem [shape: f32[16,128], index: 13, kind: output, shape index: {}]
  %s14 = sld [smem:[#allocation0]]
  $region66: #{hopping_nn_forward.1} parent=0
    _
  %s16 = ssub.s32 1, %s14
  %s17 = scalar_select 0, %s16, %s14
  // Predicated region
  $region2: #{hopping_nn_forward.1} parent=0 // pred_check
    _
  $region3: #{hopping_nn_forward.1} parent=0 // pred_check_branch
    %19 = sbr.rel (0) target = $region5
  $region4: #{hopping_nn_forward.1} parent=0 // pred_region
    _
  $region5: #{hopping_nn_forward.1} parent=0 // pred_fallthru
    _
  // Predicated region
  $region6: #{hopping_nn_forward.1} parent=0 // pred_check
    _
  $region7: #{hopping_nn_forward.1} parent=0 // pred_check_branch
    %21 = sbr.rel (0) target = $region9
  $region8: #{hopping_nn_forward.1} parent=0 // pred_region
    _
  $region9: #{hopping_nn_forward.1} parent=0 // pred_fallthru
    _
  // Predicated region
  $region10: #{hopping_nn_forward.1} parent=0 // pred_check
    _
  $region11: #{hopping_nn_forward.1} parent=0 // pred_check_branch
    %23 = sbr.rel (0) target = $region13
  $region12: #{hopping_nn_forward.1} parent=0 // pred_region
    _
  $region13: #{hopping_nn_forward.1} parent=0 // pred_fallthru
    _
  // Predicated region
  $region14: #{hopping_nn_forward.1} parent=0 // pred_check
    _
  $region15: #{hopping_nn_forward.1} parent=0 // pred_check_branch
    %25 = sbr.rel (0) target = $region17
  $region16: #{hopping_nn_forward.1} parent=0 // pred_region
    _
  $region17: #{hopping_nn_forward.1} parent=0 // pred_fallthru
    _
  // Predicated region
  $region18: #{hopping_nn_forward.1} parent=0 // pred_check
    _
  $region19: #{hopping_nn_forward.1} parent=0 // pred_check_branch
    %27 = sbr.rel (0) target = $region21
  $region20: #{hopping_nn_forward.1} parent=0 // pred_region
    _
  $region21: #{hopping_nn_forward.1} parent=0 // pred_fallthru
    _
  // Predicated region
  $region22: #{hopping_nn_forward.1} parent=0 // pred_check
    _
  $region23: #{hopping_nn_forward.1} parent=0 // pred_check_branch
    %29 = sbr.rel (0) target = $region25
  $region24: #{hopping_nn_forward.1} parent=0 // pred_region
    _
  $region25: #{hopping_nn_forward.1} parent=0 // pred_fallthru
    _
  // Predicated region
  $region26: #{hopping_nn_forward.1} parent=0 // pred_check
    _
  $region27: #{hopping_nn_forward.1} parent=0 // pred_check_branch
    %31 = sbr.rel (0) target = $region29
  $region28: #{hopping_nn_forward.1} parent=0 // pred_region
    _
  $region29: #{hopping_nn_forward.1} parent=0 // pred_fallthru
    _
  // Predicated region
  $region30: #{hopping_nn_forward.1} parent=0 // pred_check
    _
  $region31: #{hopping_nn_forward.1} parent=0 // pred_check_branch
    %33 = sbr.rel (0) target = $region33
  $region32: #{hopping_nn_forward.1} parent=0 // pred_region
    _
  $region33: #{hopping_nn_forward.1} parent=0 // pred_fallthru
    _
  // Predicated region
  $region34: #{hopping_nn_forward.1} parent=0 // pred_check
    _
  $region35: #{hopping_nn_forward.1} parent=0 // pred_check_branch
    %35 = sbr.rel (0) target = $region37
  $region36: #{hopping_nn_forward.1} parent=0 // pred_region
    _
  $region37: #{hopping_nn_forward.1} parent=0 // pred_fallthru
    _
  // Predicated region
  $region38: #{hopping_nn_forward.1} parent=0 // pred_check
    _
  $region39: #{hopping_nn_forward.1} parent=0 // pred_check_branch
    %37 = sbr.rel (0) target = $region41
  $region40: #{hopping_nn_forward.1} parent=0 // pred_region
    _
  $region41: #{hopping_nn_forward.1} parent=0 // pred_fallthru
    _
  // Predicated region
  $region42: #{hopping_nn_forward.1} parent=0 // pred_check
    _
  $region43: #{hopping_nn_forward.1} parent=0 // pred_check_branch
    %39 = sbr.rel (0) target = $region45
  $region44: #{hopping_nn_forward.1} parent=0 // pred_region
    _
  $region45: #{hopping_nn_forward.1} parent=0 // pred_fallthru
    _
  // Predicated region
  $region46: #{hopping_nn_forward.1} parent=0 // pred_check
    _
  $region47: #{hopping_nn_forward.1} parent=0 // pred_check_branch
    %41 = sbr.rel (0) target = $region49
  $region48: #{hopping_nn_forward.1} parent=0 // pred_region
    _
  $region49: #{hopping_nn_forward.1} parent=0 // pred_fallthru
    _
  // Predicated region
  $region50: #{hopping_nn_forward.1} parent=0 // pred_check
    _
  $region51: #{hopping_nn_forward.1} parent=0 // pred_check_branch
    %43 = sbr.rel (0) target = $region53
  $region52: #{hopping_nn_forward.1} parent=0 // pred_region
    _
  $region53: #{hopping_nn_forward.1} parent=0 // pred_fallthru
    _
  %p44 = scmp.eq.s32.totalorder 0, 0
  // Predicated region
  $region54: #{hopping_nn_forward.1} parent=0 // pred_check
    %p45 = pneg %p44
  $region55: #{hopping_nn_forward.1} parent=0 // pred_check_branch
    %47 = sbr.rel (%p45) target = $region57
  $region56: #{hopping_nn_forward.1} parent=0 // pred_region
    %v48 = vld [vmem:[%s0] sm:$0xff]
    %v49 = vld [vmem:[%s0 + $0x8] sm:$0xff]
    %v50 = vld [vmem:[%s1] sm:$0xff]
    %v51 = vld [vmem:[%s1 + $0x8] sm:$0xff]
    %v52 = vld [vmem:[%s1 + $0x10] sm:$0xff]
    %v53 = vld [vmem:[%s1 + $0x18] sm:$0xff]
    %v54 = vld [vmem:[%s1 + $0x20] sm:$0xff]
    %v55 = vld [vmem:[%s1 + $0x28] sm:$0xff]
    %v56 = vld [vmem:[%s1 + $0x30] sm:$0xff]
    %v57 = vld [vmem:[%s1 + $0x38] sm:$0xff]
    %v58 = vld [vmem:[%s1 + $0x40] sm:$0xff]
    %v59 = vld [vmem:[%s1 + $0x48] sm:$0xff]
    %v60 = vld [vmem:[%s1 + $0x50] sm:$0xff]
    %v61 = vld [vmem:[%s1 + $0x58] sm:$0xff]
    %v62 = vld [vmem:[%s1 + $0x60] sm:$0xff]
    %v63 = vld [vmem:[%s1 + $0x68] sm:$0xff]
    %v64 = vld [vmem:[%s1 + $0x70] sm:$0xff]
    %v65 = vld [vmem:[%s1 + $0x78] sm:$0xff]
    %v66 = vld [vmem:[%s2] sm:$0x1]
    %v68 = vperm.slane %v66, 0
    %70 = vmatpush.msra.mxu0 %v65
    %71 = vmatpush.msra.mxu0 %v64
    %72 = vmatpush.msra.mxu0 %v63
    %73 = vmatpush.msra.mxu0 %v62
    %74 = vmatpush.msra.mxu0 %v61
    %75 = vmatpush.msra.mxu0 %v60
    %76 = vmatpush.msra.mxu0 %v59
    %77 = vmatpush.msra.mxu0 %v58
    %78 = vmatpush.msra.mxu0 %v57
    %79 = vmatpush.msra.mxu0 %v56
    %80 = vmatpush.msra.mxu0 %v55
    %81 = vmatpush.msra.mxu0 %v54
    %82 = vmatpush.msra.mxu0 %v53
    %83 = vmatpush.msra.mxu0 %v52
    %84 = vmatpush.msra.mxu0 %v51
    %85 = vmatpush.msra.mxu0 %v50
    %86 = vmatmul.f32.gmra.mxu0 %v48
    %v87 = vpop.f32.mrf.mxu0
    %v88 = vadd.f32 %v68, %v87
    %89 = vmatmul.f32.gmra.mxu0 %v49
    %v90 = vpop.f32.mrf.mxu0
    %v91 = vadd.f32 %v68, %v90
    %92 = vdwg.mxu0
    %v93 = vmax.f32 %v88, 0.0
    %v94 = vmax.f32 %v91, 0.0
    %v95 = vld [vmem:[%s3] sm:$0xff]
    %v96 = vld [vmem:[%s3 + $0x8] sm:$0xff]
    %v97 = vld [vmem:[%s3 + $0x10] sm:$0xff]
    %v98 = vld [vmem:[%s3 + $0x18] sm:$0xff]
    %v99 = vld [vmem:[%s3 + $0x20] sm:$0xff]
    %v100 = vld [vmem:[%s3 + $0x28] sm:$0xff]
    %v101 = vld [vmem:[%s3 + $0x30] sm:$0xff]
    %v102 = vld [vmem:[%s3 + $0x38] sm:$0xff]
    %v103 = vld [vmem:[%s3 + $0x40] sm:$0xff]
    %v104 = vld [vmem:[%s3 + $0x48] sm:$0xff]
    %v105 = vld [vmem:[%s3 + $0x50] sm:$0xff]
    %v106 = vld [vmem:[%s3 + $0x58] sm:$0xff]
    %v107 = vld [vmem:[%s3 + $0x60] sm:$0xff]
    %v108 = vld [vmem:[%s3 + $0x68] sm:$0xff]
    %v109 = vld [vmem:[%s3 + $0x70] sm:$0xff]
    %v110 = vld [vmem:[%s3 + $0x78] sm:$0xff]
    %v111 = vld [vmem:[%s4] sm:$0x1]
    %v113 = vperm.slane %v111, 0
    %115 = vmatpush.msra.mxu0 %v110
    %116 = vmatpush.msra.mxu0 %v109
    %117 = vmatpush.msra.mxu0 %v108
    %118 = vmatpush.msra.mxu0 %v107
    %119 = vmatpush.msra.mxu0 %v106
    %120 = vmatpush.msra.mxu0 %v105
    %121 = vmatpush.msra.mxu0 %v104
    %122 = vmatpush.msra.mxu0 %v103
    %123 = vmatpush.msra.mxu0 %v102
    %124 = vmatpush.msra.mxu0 %v101
    %125 = vmatpush.msra.mxu0 %v100
    %126 = vmatpush.msra.mxu0 %v99
    %127 = vmatpush.msra.mxu0 %v98
    %128 = vmatpush.msra.mxu0 %v97
    %129 = vmatpush.msra.mxu0 %v96
    %130 = vmatpush.msra.mxu0 %v95
    %131 = vmatmul.f32.gmra.mxu0 %v93
    %v132 = vpop.f32.mrf.mxu0
    %v133 = vadd.f32 %v113, %v132
    %134 = vmatmul.f32.gmra.mxu0 %v94
    %v135 = vpop.f32.mrf.mxu0
    %v136 = vadd.f32 %v113, %v135
    %137 = vdwg.mxu0
    %138 = vst [vmem:[#allocation2] sm:$0xff] %v133
    %139 = vst [vmem:[#allocation2 + $0x8] sm:$0xff] %v136
  $region57: #{hopping_nn_forward.1} parent=0 // pred_fallthru
    _
  %v140 = vld [vmem:[%s10] sm:$0xff]
  %v141 = vld [vmem:[%s10 + $0x8] sm:$0xff]
  %v142 = vld [vmem:[%s11] sm:$0xff]
  %v143 = vld [vmem:[%s11 + $0x8] sm:$0xff]
  %v144 = vlaneseq
  %v145 = vand.u32 %v144, 127
  %146 = vset.pattern.permute.xlu0 0
  %147 = vperm.xlu0 %146, %v140
  %v148 = vpop.permute.xlu0 %147
  %149 = vset.pattern.permute.xlu0 0
  %150 = vperm.xlu0 %149, %v141
  %v151 = vpop.permute.xlu0 %150
  %vm152 = vcmp.eq.s32.totalorder %v145, %v148
  %vm153 = vcmp.eq.s32.totalorder %v145, %v151
  %v154 = vsel %vm152, 1, 0
  %v155 = vsel %vm153, 1, 0
  %v156 = vcvt.s32.f32 %v154
  %v157 = vcvt.s32.f32 %v155
  %158 = vset.pattern.permute.xlu0 1
  %159 = vperm.xlu0 %158, %v140
  %v160 = vpop.permute.xlu0 %159
  %161 = vset.pattern.permute.xlu0 1
  %162 = vperm.xlu0 %161, %v141
  %v163 = vpop.permute.xlu0 %162
  %vm164 = vcmp.eq.s32.totalorder %v145, %v160
  %vm165 = vcmp.eq.s32.totalorder %v145, %v163
  %v166 = vsel %vm164, 1, 0
  %v167 = vsel %vm165, 1, 0
  %v168 = vcvt.s32.f32 %v166
  %v169 = vcvt.s32.f32 %v167
  %v170 = vadd.f32 %v156, %v168
  %v171 = vadd.f32 %v157, %v169
  %173 = vset.pattern.permute.xlu0 0
  %174 = vperm.xlu0 %173, %v142
  %v175 = vpop.permute.xlu0 %174
  %178 = vset.pattern.permute.xlu0 0
  %179 = vperm.xlu0 %178, %v143
  %v180 = vpop.permute.xlu0 %179
  %v182 = vmul.f32 %v170, %v175
  %v183 = vmul.f32 %v171, %v180
  %v184 = vld [vmem:[#allocation2] sm:$0xff]
  %v185 = vld [vmem:[#allocation2 + $0x8] sm:$0xff]
  %vm186 = vcmask 130048
  %v188 = vsel %vm186, %v182, 0
  %v191 = vsel %vm186, %v183, 0
  %193 = vmatpush.msra.mxu0 0.0
  %194 = vmatpush.msra.mxu0 0.0
  %195 = vmatpush.msra.mxu0 0.0
  %196 = vmatpush.msra.mxu0 0.0
  %197 = vmatpush.msra.mxu0 0.0
  %198 = vmatpush.msra.mxu0 0.0
  %199 = vmatpush.msra.mxu0 0.0
  %200 = vmatpush.msra.mxu0 0.0
  %201 = vmatpush.msra.mxu0 0.0
  %202 = vmatpush.msra.mxu0 0.0
  %203 = vmatpush.msra.mxu0 0.0
  %204 = vmatpush.msra.mxu0 0.0
  %205 = vmatpush.msra.mxu0 0.0
  %206 = vmatpush.msra.mxu0 0.0
  %207 = vmatpush.msra.mxu0 %v185
  %208 = vmatpush.msra.mxu0 %v184
  %209 = vmatmul.f32.gmra.mxu0 %v188
  %v210 = vpop.f32.mrf.mxu0
  %v211 = vadd.f32 0.0, %v210
  %212 = vmatmul.f32.gmra.mxu0 %v191
  %v213 = vpop.f32.mrf.mxu0
  %v214 = vadd.f32 0.0, %v213
  %215 = vdwg.mxu0
  %v216 = vld [vmem:[%s5] sm:$0xff]
  %v217 = vld [vmem:[%s5 + $0x8] sm:$0xff]
  %v218 = vld [vmem:[%s5 + $0x10] sm:$0xff]
  %v219 = vld [vmem:[%s5 + $0x18] sm:$0xff]
  %v220 = vld [vmem:[%s5 + $0x20] sm:$0xff]
  %v221 = vld [vmem:[%s5 + $0x28] sm:$0xff]
  %v222 = vld [vmem:[%s5 + $0x30] sm:$0xff]
  %v223 = vld [vmem:[%s5 + $0x38] sm:$0xff]
  %v224 = vld [vmem:[%s5 + $0x40] sm:$0xff]
  %v225 = vld [vmem:[%s5 + $0x48] sm:$0xff]
  %v226 = vld [vmem:[%s5 + $0x50] sm:$0xff]
  %v227 = vld [vmem:[%s5 + $0x58] sm:$0xff]
  %v228 = vld [vmem:[%s5 + $0x60] sm:$0xff]
  %v229 = vld [vmem:[%s5 + $0x68] sm:$0xff]
  %v230 = vld [vmem:[%s5 + $0x70] sm:$0xff]
  %v231 = vld [vmem:[%s5 + $0x78] sm:$0xff]
  %v232 = vld [vmem:[%s12] sm:$0xff]
  %v233 = vld [vmem:[%s12 + $0x8] sm:$0xff]
  %v234 = vld [vmem:[%s6] sm:$0xff]
  %v235 = vld [vmem:[%s6 + $0x8] sm:$0xff]
  %v236 = vld [vmem:[%s6 + $0x10] sm:$0xff]
  %v237 = vld [vmem:[%s6 + $0x18] sm:$0xff]
  %v238 = vld [vmem:[%s6 + $0x20] sm:$0xff]
  %v239 = vld [vmem:[%s6 + $0x28] sm:$0xff]
  %v240 = vld [vmem:[%s6 + $0x30] sm:$0xff]
  %v241 = vld [vmem:[%s6 + $0x38] sm:$0xff]
  %v242 = vld [vmem:[%s6 + $0x40] sm:$0xff]
  %v243 = vld [vmem:[%s6 + $0x48] sm:$0xff]
  %v244 = vld [vmem:[%s6 + $0x50] sm:$0xff]
  %v245 = vld [vmem:[%s6 + $0x58] sm:$0xff]
  %v246 = vld [vmem:[%s6 + $0x60] sm:$0xff]
  %v247 = vld [vmem:[%s6 + $0x68] sm:$0xff]
  %v248 = vld [vmem:[%s6 + $0x70] sm:$0xff]
  %v249 = vld [vmem:[%s6 + $0x78] sm:$0xff]
  %250 = vmatpush.msra.mxu0 %v249
  %251 = vmatpush.msra.mxu0 %v248
  %252 = vmatpush.msra.mxu0 %v247
  %253 = vmatpush.msra.mxu0 %v246
  %254 = vmatpush.msra.mxu0 %v245
  %255 = vmatpush.msra.mxu0 %v244
  %256 = vmatpush.msra.mxu0 %v243
  %257 = vmatpush.msra.mxu0 %v242
  %258 = vmatpush.msra.mxu0 %v241
  %259 = vmatpush.msra.mxu0 %v240
  %260 = vmatpush.msra.mxu0 %v239
  %261 = vmatpush.msra.mxu0 %v238
  %262 = vmatpush.msra.mxu0 %v237
  %263 = vmatpush.msra.mxu0 %v236
  %264 = vmatpush.msra.mxu0 %v235
  %265 = vmatpush.msra.mxu0 %v234
  %266 = vmatmul.f32.gmra.mxu0 %v232
  %v267 = vpop.f32.mrf.mxu0
  %v268 = vadd.f32 0.0, %v267
  %269 = vmatmul.f32.gmra.mxu0 %v233
  %v270 = vpop.f32.mrf.mxu0
  %v271 = vadd.f32 0.0, %v270
  %272 = vdwg.mxu0
  %273 = vmatpush.msra.mxu0 %v231
  %274 = vmatpush.msra.mxu0 %v230
  %275 = vmatpush.msra.mxu0 %v229
  %276 = vmatpush.msra.mxu0 %v228
  %277 = vmatpush.msra.mxu0 %v227
  %278 = vmatpush.msra.mxu0 %v226
  %279 = vmatpush.msra.mxu0 %v225
  %280 = vmatpush.msra.mxu0 %v224
  %281 = vmatpush.msra.mxu0 %v223
  %282 = vmatpush.msra.mxu0 %v222
  %283 = vmatpush.msra.mxu0 %v221
  %284 = vmatpush.msra.mxu0 %v220
  %285 = vmatpush.msra.mxu0 %v219
  %286 = vmatpush.msra.mxu0 %v218
  %287 = vmatpush.msra.mxu0 %v217
  %288 = vmatpush.msra.mxu0 %v216
  %289 = vmatmul.f32.gmra.mxu0 %v211
  %v290 = vpop.f32.mrf.mxu0
  %v291 = vadd.f32 %v268, %v290
  %292 = vmatmul.f32.gmra.mxu0 %v214
  %v293 = vpop.f32.mrf.mxu0
  %v294 = vadd.f32 %v271, %v293
  %295 = vdwg.mxu0
  %v296 = vld [vmem:[%s7] sm:$0x1]
  %v298 = vperm.slane %v296, 0
  %v300 = vadd.f32 %v291, %v298
  %v301 = vadd.f32 %v294, %v298
  %v302 = vmax.f32 %v300, 0.0
  %v303 = vmax.f32 %v301, 0.0
  %v304 = vld [vmem:[%s8] sm:$0xff]
  %v305 = vld [vmem:[%s8 + $0x8] sm:$0xff]
  %v306 = vld [vmem:[%s8 + $0x10] sm:$0xff]
  %v307 = vld [vmem:[%s8 + $0x18] sm:$0xff]
  %v308 = vld [vmem:[%s8 + $0x20] sm:$0xff]
  %v309 = vld [vmem:[%s8 + $0x28] sm:$0xff]
  %v310 = vld [vmem:[%s8 + $0x30] sm:$0xff]
  %v311 = vld [vmem:[%s8 + $0x38] sm:$0xff]
  %v312 = vld [vmem:[%s8 + $0x40] sm:$0xff]
  %v313 = vld [vmem:[%s8 + $0x48] sm:$0xff]
  %v314 = vld [vmem:[%s8 + $0x50] sm:$0xff]
  %v315 = vld [vmem:[%s8 + $0x58] sm:$0xff]
  %v316 = vld [vmem:[%s8 + $0x60] sm:$0xff]
  %v317 = vld [vmem:[%s8 + $0x68] sm:$0xff]
  %v318 = vld [vmem:[%s8 + $0x70] sm:$0xff]
  %v319 = vld [vmem:[%s8 + $0x78] sm:$0xff]
  %v320 = vld [vmem:[%s9] sm:$0x1]
  %v322 = vperm.slane %v320, 0
  %324 = vmatpush.msra.mxu0 %v319
  %325 = vmatpush.msra.mxu0 %v318
  %326 = vmatpush.msra.mxu0 %v317
  %327 = vmatpush.msra.mxu0 %v316
  %328 = vmatpush.msra.mxu0 %v315
  %329 = vmatpush.msra.mxu0 %v314
  %330 = vmatpush.msra.mxu0 %v313
  %331 = vmatpush.msra.mxu0 %v312
  %332 = vmatpush.msra.mxu0 %v311
  %333 = vmatpush.msra.mxu0 %v310
  %334 = vmatpush.msra.mxu0 %v309
  %335 = vmatpush.msra.mxu0 %v308
  %336 = vmatpush.msra.mxu0 %v307
  %337 = vmatpush.msra.mxu0 %v306
  %338 = vmatpush.msra.mxu0 %v305
  %339 = vmatpush.msra.mxu0 %v304
  %340 = vmatmul.f32.gmra.mxu0 %v302
  %v341 = vpop.f32.mrf.mxu0
  %v342 = vadd.f32 %v322, %v341
  %343 = vmatmul.f32.gmra.mxu0 %v303
  %v344 = vpop.f32.mrf.mxu0
  %v345 = vadd.f32 %v322, %v344
  %346 = vdwg.mxu0
  %347 = vst [vmem:[%s13] sm:$0xff] %v342
  %348 = vst [vmem:[%s13 + $0x8] sm:$0xff] %v345
  // Predicated region
  $region58: #{hopping_nn_forward.1} parent=0 // pred_check
    _
  $region59: #{hopping_nn_forward.1} parent=0 // pred_check_branch
    %350 = sbr.rel (0) target = $region61
  $region60: #{hopping_nn_forward.1} parent=0 // pred_region
    _
  $region61: #{hopping_nn_forward.1} parent=0 // pred_fallthru
    _
  // Predicated region
  $region62: #{hopping_nn_forward.1} parent=0 // pred_check
    _
  $region63: #{hopping_nn_forward.1} parent=0 // pred_check_branch
    %352 = sbr.rel (0) target = $region65
  $region64: #{hopping_nn_forward.1} parent=0 // pred_region
    _
  $region65: #{hopping_nn_forward.1} parent=0 // pred_fallthru
    _

</llo_original>
